<compile_context>
chip_gen: v5e
topology: v5e:2x2
jax: 0.10.0
libtpu: 0.0.40
codegen_flags: <defaults>
</compile_context>

<pallas_src>
import jax
import jax.numpy as jnp
from jax import lax
from jax.experimental import pallas as pl
from jax.experimental.pallas import tpu as pltpu


_LANE = 128
_SUBLANE = 8
_DEFAULT_BLOCK_ROWS = 1024


def _round_up(x, m):
    return ((x + m - 1) // m) * m


def _vmem_budget_bytes():
    # Shape the VMEM budget from the actual chip: ~48 MiB on v7x (64 MiB physical),
    # up to ~96 MiB on v5e/v6e (128 MiB).  Fallback is safe on every generation.
    try:
        cap = int(pltpu.get_tpu_info().vmem_capacity_bytes)
    except Exception:
        cap = 64 * 1024 * 1024
    return min(cap * 3 // 4, 96 * 1024 * 1024)


def _tiling(P, N, d, dv, C_pad, has_neg, block_rows):
    budget = _vmem_budget_bytes()

    # Cluster tiling: keep the whole (d, C_pad) weight slab resident whenever it fits
    # (removes the c_tiles x re-streaming of the row data through HBM).
    if d * C_pad * 4 * 2 <= budget // 4:          # x2: Pallas double-buffers the block
        tc = C_pad
    elif C_pad % 256 == 0:
        tc = 256                                  # full MXU output width on v6e/v7x
    else:
        tc = _LANE                                # v5e-native width / small C_pad
    c_tiles = C_pad // tc

    n_sides = 2 if has_neg else 1
    rows_max = max(P, N) if has_neg else P

    # Row-tile size derived from shapes: double-buffered row inputs + (tm, tc)/(tm, d)
    # in-kernel temporaries must stay inside the budget (keeps v7x's 64 MiB safe while
    # letting v5e/v6e use big tiles to amortize per-grid-step overhead).
    per_row = 4 * (n_sides * (d + dv) * 2 + n_sides * (tc + d + dv) + tc)
    fixed = 4 * (2 * d * tc + 8 * tc + 2 * (d + dv))
    tm_cap = max(_SUBLANE, ((budget - fixed) // max(per_row, 1)) // _SUBLANE * _SUBLANE)
    tm = min(_round_up(block_rows, _SUBLANE), _round_up(rows_max, _SUBLANE), tm_cap)

    r_tiles_total = pl.cdiv(rows_max, tm)
    # v7x has two TensorCores: when there is only one cluster tile, split the row range
    # across a leading size-2 "parallel" grid axis (near-free on single-core v5e/v6e).
    split_rows = (c_tiles == 1) and (r_tiles_total >= 2)
    n_par = 2 if split_rows else 1
    r_tiles = pl.cdiv(r_tiles_total, n_par)
    return tc, c_tiles, tm, r_tiles, n_par, split_rows, budget


def _lvsm_reduce(pX, pV, Wt_pad, c, nX=None, nV=None, *, block_rows=_DEFAULT_BLOCK_ROWS):
    """Returns, for every cluster:  sum_p (pos - softplus(pos)) [- sum_n softplus(neg)]."""
    has_neg = nX is not None
    P, d = pX.shape
    dv = pV.shape[1]
    d_w, C_pad = Wt_pad.shape
    assert d_w == d and C_pad % _LANE == 0
    N = nX.shape[0] if has_neg else 0
    if has_neg:
        assert N >= 1 and nX.shape[1] == d and nV.shape == (N, dv)

    tc, c_tiles, tm, r_tiles, n_par, split_rows, budget = _tiling(
        P, N, d, dv, C_pad, has_neg, block_rows)

    # Hoisted cross-tile reductions (depend on ALL positive rows -> computed once here).
    px = jnp.sum(pX.astype(jnp.float32), axis=0, keepdims=True)       # (1, d)
    pv = jnp.sum(pV.astype(jnp.float32), axis=0, keepdims=True)       # (1, dv)

    p_blocks = pl.cdiv(P, tm)
    n_blocks = pl.cdiv(N, tm) if has_neg else 1
    wt_dtype = Wt_pad.dtype

    def kernel(*refs):
        if has_neg:
            px_ref, pv_ref, pX_ref, pV_ref, nX_ref, nV_ref, Wt_ref, out_ref = refs
        else:
            px_ref, pv_ref, pX_ref, pV_ref, Wt_ref, out_ref = refs
            nX_ref = nV_ref = None

        a = pl.program_id(0)
        ri = pl.program_id(1)
        gti = a * r_tiles + ri if split_rows else ri      # global row-tile index
        row0 = gti * tm

        @pl.when(ri == 0)
        def _init():
            out_ref[...] = jnp.zeros_like(out_ref)

        Wt = Wt_ref[...]              # resident across the whole grid when c_tiles == 1
        px_b = px_ref[...]
        pv_b = pv_ref[...]

        def accum(x_ref, v_ref, n_rows, is_pos, masked):
            x = x_ref[...].astype(jnp.float32)            # (tm, d)
            v = v_ref[...].astype(jnp.float32)            # (tm, dv)
            if masked:
                valid = (row0 + lax.broadcasted_iota(jnp.int32, (tm, 1), 0)) < n_rows
                # Zero BEFORE the matmul/softplus: past-the-end block contents are
                # unspecified and must not inject NaN/Inf.
                x = jnp.where(valid, x, 0.0)
                v = jnp.where(valid, v, 0.0)
            if is_pos:
                xw = x * (px_b - x)                       # f32 prep before any MXU cast
                vterm = jnp.sum(v * (pv_b - v), axis=-1, keepdims=True)
            else:
                xw = px_b * x
                vterm = jnp.sum(v * pv_b, axis=-1, keepdims=True)
            z = jnp.dot(xw.astype(wt_dtype), Wt,
                        preferred_element_type=jnp.float32) + vterm       # (tm, tc) MXU
            if is_pos:
                # x - softplus(x) == -softplus(-x) == min(x, 0) - log1p(exp(-|x|))
                contrib = jnp.minimum(z, 0.0) - jnp.log1p(jnp.exp(-jnp.abs(z)))
            else:
                # -softplus(x)
                contrib = -(jnp.maximum(z, 0.0) + jnp.log1p(jnp.exp(-jnp.abs(z))))
            if masked:
                contrib = jnp.where(valid, contrib, 0.0)
            out_ref[...] += jnp.sum(contrib, axis=0, keepdims=True).reshape(1, 1, tc)

        def side(x_ref, v_ref, n_rows, is_pos):
            full = row0 + tm <= n_rows                    # fast unmasked path
            partial = jnp.logical_and(row0 < n_rows, jnp.logical_not(full))

            @pl.when(full)
            def _():
                accum(x_ref, v_ref, n_rows, is_pos, masked=False)

            @pl.when(partial)       # at most one partial tile; dead tiles do no work
            def _():
                accum(x_ref, v_ref, n_rows, is_pos, masked=True)

        side(pX_ref, pV_ref, P, True)
        if has_neg:
            side(nX_ref, nV_ref, N, False)

    # Index maps.  Row blocks are clamped to the last valid block so fully-dead tiles
    # (skipped in-kernel) re-map to an already-fetched block and issue no fresh DMA.
    if split_rows:
        def row_map(blocks):
            last = blocks - 1
            return lambda a, ri: (jnp.minimum(a * r_tiles + ri, last), 0)
        out_map = lambda a, ri: (a, 0, 0)
        wt_map = lambda a, ri: (0, 0)
    else:
        def row_map(blocks):
            last = blocks - 1
            return lambda a, ri: (jnp.minimum(ri, last), 0)
        out_map = lambda a, ri: (0, 0, a)
        wt_map = lambda a, ri: (0, a)
    const_map = lambda a, ri: (0, 0)

    in_specs = [
        pl.BlockSpec((1, d), const_map),
        pl.BlockSpec((1, dv), const_map),
        pl.BlockSpec((tm, d), row_map(p_blocks)),
        pl.BlockSpec((tm, dv), row_map(p_blocks)),
    ]
    args = [px, pv, pX, pV]
    if has_neg:
        in_specs += [pl.BlockSpec((tm, d), row_map(n_blocks)),
                     pl.BlockSpec((tm, dv), row_map(n_blocks))]
        args += [nX, nV]
    in_specs.append(pl.BlockSpec((d, tc), wt_map))
    args.append(Wt_pad)

    grid = (n_par if split_rows else c_tiles, r_tiles)
    rows_tot = P + (N if has_neg else 0)
    cost = pl.CostEstimate(
        flops=2 * rows_tot * d * C_pad,
        transcendentals=2 * rows_tot * C_pad,
        bytes_accessed=4 * (rows_tot * (d + dv) * c_tiles + d * C_pad
                            + d + dv + n_par * C_pad),
    )

    out = pl.pallas_call(
        kernel,
        out_shape=jax.ShapeDtypeStruct((n_par, 1, C_pad), jnp.float32),
        grid=grid,
        in_specs=in_specs,
        out_specs=pl.BlockSpec((1, 1, tc), out_map),
        compiler_params=pltpu.CompilerParams(
            dimension_semantics=("parallel", "arbitrary"),
            vmem_limit_bytes=budget,
        ),
        cost_estimate=cost,
    )(*args)
    # Sum the per-TensorCore partial rows (n_par <= 2), drop the lane padding.
    return jnp.sum(out, axis=0)[0, :c]


def expect_gamma(pX, pV, Wt_pad, c, *, block_rows=_DEFAULT_BLOCK_ROWS):
    return _lvsm_reduce(pX, pV, Wt_pad, c, block_rows=block_rows)


def maximum_score(pX, nX, pV, nV, Wt_pad, c, *, block_rows=_DEFAULT_BLOCK_ROWS):
    return _lvsm_reduce(pX, pV, Wt_pad, c, nX=nX, nV=nV, block_rows=block_rows)


class LVSMPallas:
    """Functional JAX/Pallas port of the PyTorch LVSM module (forward paths).

    If the real workload loops expect()/maximum() over many users u, batch the users into
    a single pallas_call with PrefetchScalarGridSpec (per-user row offsets + pi indexed by
    the grid) to amortize dispatch overhead.
    """

    def __init__(self, key, R_shape, alpha, c, d, m, use_bf16_mxu=False):
        self.alpha = alpha
        self.c = c
        self.d = d
        self.m_rows, self.n_cols = R_shape
        k1, k2 = jax.random.split(key)
        pi = jax.random.uniform(k1, (c, m), dtype=jnp.float32)   # torch.rand analogue
        self.pi = pi / jnp.sum(pi, axis=0, keepdims=True)
        self.W = jax.random.uniform(k2, (c, d), dtype=jnp.float32)
        # Pre-transposed + lane-padded weights, built ONCE, already in the MXU dtype
        # (no per-call transpose/pad and no per-grid-step astype on the weight block).
        c_pad = _round_up(c, _LANE)
        wt = jnp.zeros((d, c_pad), jnp.float32).at[:, :c].set(self.W.T)
        self.Wt_pad = wt.astype(jnp.bfloat16) if use_bf16_mxu else wt

    def expect(self, pX, pV, u):
        gamma = expect_gamma(pX, pV, self.Wt_pad, self.c)        # (c,)
        prob = jax.nn.softmax(gamma - 1.0, axis=0)
        onehot = jax.nn.one_hot(jnp.argmax(prob), self.c, dtype=self.pi.dtype)
        # PyTorch mutates self.pi.data[:, u] in place and returns None; functional version.
        self.pi = self.pi.at[:, u].set(onehot)
        return self.pi

    def maximum(self, pX, nX, pV, nV, u):
        pi_col = jax.lax.stop_gradient(self.pi[:, u])            # .detach()
        score = maximum_score(pX, nX, pV, nV, self.Wt_pad, self.c)
        return -jnp.dot(pi_col, score)

    def forward(self, pX, nX, pV, nV, u, expect=True):
        return self.expect(pX, pV, u) if expect else self.maximum(pX, nX, pV, nV, u)


# ---------------- plain-JAX reference (for correctness check only) ----------------
def _ref_score(pX, nX, pV, nV, W):
    px = jnp.sum(pX, axis=0)
    pv = jnp.sum(pV, axis=0)
    pos = pX * (px - pX)
    pos = jnp.sum(pos[None] * W[:, None, :], -1)
    pos = pos + jnp.sum(pV * (pv - pV), -1)
    neg = px * nX
    neg = jnp.sum(neg[None] * W[:, None, :], -1)
    neg = neg + pv @ nV.T
    alpha = jnp.concatenate([pos, neg], -1)
    return jnp.sum(pos, -1) - jnp.sum(jax.nn.softplus(alpha), -1)


def _ref_gamma(pX, pV, W):
    px = jnp.sum(pX, 0)
    pv = jnp.sum(pV, 0)
    pos = (jnp.sum((pX * (px - pX))[None] * W[:, None, :], -1)
           + jnp.sum(pV * (pv - pV), -1))
    return jnp.sum(pos, -1) - jnp.sum(jax.nn.softplus(pos), -1)


if __name__ == "__main__":
    c, d, dv, m, P, N = 4, 32, 16, 6, 8, 8
    R_shape = (m, 10)  # only .shape is used in the torch __init__

    model = LVSMPallas(jax.random.PRNGKey(42), R_shape, alpha=0.1, c=c, d=d, m=m)

    key = jax.random.PRNGKey(0)
    ks = jax.random.split(key, 12)
    pX = jax.random.normal(ks[0], (P, d), dtype=jnp.float32)
    nX = jax.random.normal(ks[1], (N, d), dtype=jnp.float32)
    pV = jax.random.normal(ks[2], (P, dv), dtype=jnp.float32)
    nV = jax.random.normal(ks[3], (N, dv), dtype=jnp.float32)
    u = 3

    # --- maximum path (expect=False): scalar loss  -pi[:,u] @ score ---
    pi_col_before = model.pi[:, u]
    loss = model.forward(pX, nX, pV, nV, u, expect=False)
    loss = jax.block_until_ready(loss)
    ref_loss = -pi_col_before @ _ref_score(pX, nX, pV, nV, model.W)
    assert jnp.allclose(loss, ref_loss, rtol=1e-3, atol=1e-3), (loss, ref_loss)

    # --- expect path (forward default): one-hot update of pi[:, u] ---
    new_pi = model.forward(pX, nX, pV, nV, u, expect=True)
    new_pi = jax.block_until_ready(new_pi)
    gamma_ref = _ref_gamma(pX, pV, model.W)
    onehot_ref = jax.nn.one_hot(jnp.argmax(jax.nn.softmax(gamma_ref - 1.0)), c)
    assert jnp.allclose(new_pi[:, u], onehot_ref), (new_pi[:, u], onehot_ref)

    # --- ragged / multi-tile check: P > N, forced tiling & row-split (partial+dead) ---
    P2, N2 = 20, 12
    pX2 = jax.random.normal(ks[4], (P2, d), dtype=jnp.float32)
    nX2 = jax.random.normal(ks[5], (N2, d), dtype=jnp.float32)
    pV2 = jax.random.normal(ks[6], (P2, dv), dtype=jnp.float32)
    nV2 = jax.random.normal(ks[7], (N2, dv), dtype=jnp.float32)
    score2 = jax.block_until_ready(
        maximum_score(pX2, nX2, pV2, nV2, model.Wt_pad, c, block_rows=8))
    ref_score2 = _ref_score(pX2, nX2, pV2, nV2, model.W)
    assert jnp.allclose(score2, ref_score2, rtol=1e-3, atol=1e-3), (score2, ref_score2)
    gamma2 = jax.block_until_ready(expect_gamma(pX2, pV2, model.Wt_pad, c, block_rows=8))
    ref_gamma2 = _ref_gamma(pX2, pV2, model.W)
    assert jnp.allclose(gamma2, ref_gamma2, rtol=1e-3, atol=1e-3), (gamma2, ref_gamma2)

    # --- ragged / multi-tile check: N > P (dead positive tiles) ---
    P3, N3 = 12, 28
    pX3 = jax.random.normal(ks[8], (P3, d), dtype=jnp.float32)
    nX3 = jax.random.normal(ks[9], (N3, d), dtype=jnp.float32)
    pV3 = jax.random.normal(ks[10], (P3, dv), dtype=jnp.float32)
    nV3 = jax.random.normal(ks[11], (N3, dv), dtype=jnp.float32)
    score3 = jax.block_until_ready(
        maximum_score(pX3, nX3, pV3, nV3, model.Wt_pad, c, block_rows=8))
    ref_score3 = _ref_score(pX3, nX3, pV3, nV3, model.W)
    assert jnp.allclose(score3, ref_score3, rtol=1e-3, atol=1e-3), (score3, ref_score3)

    print("KERNEL_OK")
</pallas_src>

<mosaic_0001>
module attributes {stable_mosaic.version = 11 : i64} {
  func.func @kernel(%arg0: i32, %arg1: i32, %arg2: memref<1x32xf32, #tpu.memory_space<vmem>>, %arg3: memref<1x16xf32, #tpu.memory_space<vmem>>, %arg4: memref<8x32xf32, #tpu.memory_space<vmem>>, %arg5: memref<8x16xf32, #tpu.memory_space<vmem>>, %arg6: memref<8x32xf32, #tpu.memory_space<vmem>>, %arg7: memref<8x16xf32, #tpu.memory_space<vmem>>, %arg8: memref<32x128xf32, #tpu.memory_space<vmem>>, %arg9: memref<1x1x128xf32, #tpu.memory_space<vmem>>) attributes {dimension_semantics = [#tpu.dimension_semantics<parallel>, #tpu.dimension_semantics<arbitrary>], iteration_bounds = array<i64: 1, 1>, scalar_prefetch = 0 : i64, scratch_operands = 0 : i64, tpu.core_type = #tpu.core_type<tc>, window_params = [{pipeline_mode = #tpu.pipeline_mode<synchronous>, transform_indices = @transform_0, window_bounds = array<i64: 1, 32>}, {pipeline_mode = #tpu.pipeline_mode<synchronous>, transform_indices = @transform_1, window_bounds = array<i64: 1, 16>}, {transform_indices = @transform_2, window_bounds = array<i64: 8, 32>}, {transform_indices = @transform_3, window_bounds = array<i64: 8, 16>}, {transform_indices = @transform_4, window_bounds = array<i64: 8, 32>}, {transform_indices = @transform_5, window_bounds = array<i64: 8, 16>}, {transform_indices = @transform_6, window_bounds = array<i64: 32, 128>}, {transform_indices = @transform_7, window_bounds = array<i64: 1, 1, 128>}]} {
    %c8_i32 = arith.constant 8 : i32
    %0 = arith.muli %arg1, %c8_i32 : i32
    %c0_i32 = arith.constant 0 : i32
    %1 = arith.cmpi eq, %arg1, %c0_i32 : i32
    %2 = arith.extui %1 : i1 to i32
    %c0_i32_0 = arith.constant 0 : i32
    %3 = arith.cmpi ne, %2, %c0_i32_0 : i32
    scf.if %3 {
      %cst = arith.constant 0.000000e+00 : f32
      %25 = vector.broadcast %cst : f32 to vector<1x1x128xf32>
      %c0_17 = arith.constant 0 : index
      %c0_18 = arith.constant 0 : index
      %c0_19 = arith.constant 0 : index
      %26 = vector.load %arg9[%c0_17, %c0_18, %c0_19] : memref<1x1x128xf32, #tpu.memory_space<vmem>>, vector<1x1x128xf32>
      tpu.vector_store %arg9[%c0_17, %c0_18, %c0_19], %25 {strides = array<i32>} : memref<1x1x128xf32, #tpu.memory_space<vmem>>, vector<1x1x128xf32>,
    } else {
    }
    %c0 = arith.constant 0 : index
    %c0_1 = arith.constant 0 : index
    %4 = vector.load %arg8[%c0, %c0_1] : memref<32x128xf32, #tpu.memory_space<vmem>>, vector<32x128xf32>
    %c0_2 = arith.constant 0 : index
    %c0_3 = arith.constant 0 : index
    %5 = vector.load %arg2[%c0_2, %c0_3] : memref<1x32xf32, #tpu.memory_space<vmem>>, vector<1x32xf32>
    %c0_4 = arith.constant 0 : index
    %c0_5 = arith.constant 0 : index
    %6 = vector.load %arg3[%c0_4, %c0_5] : memref<1x16xf32, #tpu.memory_space<vmem>>, vector<1x16xf32>
    %c8_i32_6 = arith.constant 8 : i32
    %7 = arith.addi %0, %c8_i32_6 : i32
    %c8_i32_7 = arith.constant 8 : i32
    %8 = arith.cmpi sle, %7, %c8_i32_7 : i32
    %c8_i32_8 = arith.constant 8 : i32
    %9 = arith.cmpi slt, %0, %c8_i32_8 : i32
    %true = arith.constant true
    %10 = arith.xori %8, %true : i1
    %11 = arith.andi %9, %10 : i1
    %12 = arith.extui %8 : i1 to i32
    %c0_i32_9 = arith.constant 0 : i32
    %13 = arith.cmpi ne, %12, %c0_i32_9 : i32
    scf.if %13 {
      %c0_17 = arith.constant 0 : index
      %c0_18 = arith.constant 0 : index
      %25 = vector.load %arg4[%c0_17, %c0_18] : memref<8x32xf32, #tpu.memory_space<vmem>>, vector<8x32xf32>
      %c0_19 = arith.constant 0 : index
      %c0_20 = arith.constant 0 : index
      %26 = vector.load %arg5[%c0_19, %c0_20] : memref<8x16xf32, #tpu.memory_space<vmem>>, vector<8x16xf32>
      %27 = vector.broadcast %5 : vector<1x32xf32> to vector<8x32xf32>
      %28 = arith.subf %27, %25 : vector<8x32xf32>
      %29 = arith.mulf %25, %28 : vector<8x32xf32>
      %30 = vector.broadcast %6 : vector<1x16xf32> to vector<8x16xf32>
      %31 = arith.subf %30, %26 : vector<8x16xf32>
      %32 = arith.mulf %26, %31 : vector<8x16xf32>
      %cst = arith.constant dense<0.000000e+00> : vector<8xf32>
      %33 = vector.multi_reduction <add>, %32, %cst [1] : vector<8x16xf32> to vector<8xf32>
      %34 = vector.shape_cast %33 : vector<8xf32> to vector<8x1xf32>
      %cst_21 = arith.constant dense<0.000000e+00> : vector<8x128xf32>
      %35 = tpu.matmul %29, %4, %cst_21 {dimension_numbers = #tpu.dot_dimension_numbers<[1], [0], [0], [1], [0, 0, 1, 1], [], []>} : vector<8x32xf32>, vector<32x128xf32>, vector<8x128xf32> -> vector<8x128xf32>
      %36 = vector.broadcast %34 : vector<8x1xf32> to vector<8x128xf32>
      %37 = arith.addf %35, %36 : vector<8x128xf32>
      %cst_22 = arith.constant 0.000000e+00 : f32
      %38 = vector.broadcast %cst_22 : f32 to vector<8x128xf32>
      %39 = arith.minimumf %37, %38 : vector<8x128xf32>
      %40 = math.absf %37 : vector<8x128xf32>
      %cst_23 = arith.constant 0.000000e+00 : f32
      %41 = vector.broadcast %cst_23 : f32 to vector<8x128xf32>
      %42 = arith.subf %41, %40 : vector<8x128xf32>
      %43 = math.exp %42 : vector<8x128xf32>
      %44 = math.log1p %43 : vector<8x128xf32>
      %45 = arith.subf %39, %44 : vector<8x128xf32>
      %c0_24 = arith.constant 0 : index
      %c0_25 = arith.constant 0 : index
      %c0_26 = arith.constant 0 : index
      %46 = vector.load %arg9[%c0_24, %c0_25, %c0_26] : memref<1x1x128xf32, #tpu.memory_space<vmem>>, vector<1x1x128xf32>
      %cst_27 = arith.constant dense<0.000000e+00> : vector<128xf32>
      %47 = vector.multi_reduction <add>, %45, %cst_27 [0] : vector<8x128xf32> to vector<128xf32>
      %48 = vector.shape_cast %47 : vector<128xf32> to vector<1x128xf32>
      %49 = vector.shape_cast %48 : vector<1x128xf32> to vector<1x1x128xf32>
      %50 = arith.addf %46, %49 : vector<1x1x128xf32>
      %c0_28 = arith.constant 0 : index
      %c0_29 = arith.constant 0 : index
      %c0_30 = arith.constant 0 : index
      %51 = vector.load %arg9[%c0_28, %c0_29, %c0_30] : memref<1x1x128xf32, #tpu.memory_space<vmem>>, vector<1x1x128xf32>
      tpu.vector_store %arg9[%c0_28, %c0_29, %c0_30], %50 {strides = array<i32>} : memref<1x1x128xf32, #tpu.memory_space<vmem>>, vector<1x1x128xf32>,
    } else {
    }
    %14 = arith.extui %11 : i1 to i32
    %c0_i32_10 = arith.constant 0 : i32
    %15 = arith.cmpi ne, %14, %c0_i32_10 : i32
    scf.if %15 {
      %c0_17 = arith.constant 0 : index
      %c0_18 = arith.constant 0 : index
      %25 = vector.load %arg4[%c0_17, %c0_18] : memref<8x32xf32, #tpu.memory_space<vmem>>, vector<8x32xf32>
      %c0_19 = arith.constant 0 : index
      %c0_20 = arith.constant 0 : index
      %26 = vector.load %arg5[%c0_19, %c0_20] : memref<8x16xf32, #tpu.memory_space<vmem>>, vector<8x16xf32>
      %27 = tpu.iota {dimensions = array<i32: 0>} : vector<8x1xi32>
      %28 = vector.broadcast %0 : i32 to vector<8x1xi32>
      %29 = arith.addi %28, %27 : vector<8x1xi32>
      %c8_i32_21 = arith.constant 8 : i32
      %30 = vector.broadcast %c8_i32_21 : i32 to vector<8x1xi32>
      %31 = arith.cmpi slt, %29, %30 : vector<8x1xi32>
      %cst = arith.constant 0.000000e+00 : f32
      %32 = vector.shape_cast %31 : vector<8x1xi1> to vector<8x1xi1>
      %33 = vector.broadcast %32 : vector<8x1xi1> to vector<8x32xi1>
      %34 = vector.broadcast %cst : f32 to vector<8x32xf32>
      %35 = arith.select %33, %25, %34 : vector<8x32xi1>, vector<8x32xf32>
      %cst_22 = arith.constant 0.000000e+00 : f32
      %36 = vector.shape_cast %31 : vector<8x1xi1> to vector<8x1xi1>
      %37 = vector.broadcast %36 : vector<8x1xi1> to vector<8x16xi1>
      %38 = vector.broadcast %cst_22 : f32 to vector<8x16xf32>
      %39 = arith.select %37, %26, %38 : vector<8x16xi1>, vector<8x16xf32>
      %40 = vector.broadcast %5 : vector<1x32xf32> to vector<8x32xf32>
      %41 = arith.subf %40, %35 : vector<8x32xf32>
      %42 = arith.mulf %35, %41 : vector<8x32xf32>
      %43 = vector.broadcast %6 : vector<1x16xf32> to vector<8x16xf32>
      %44 = arith.subf %43, %39 : vector<8x16xf32>
      %45 = arith.mulf %39, %44 : vector<8x16xf32>
      %cst_23 = arith.constant dense<0.000000e+00> : vector<8xf32>
      %46 = vector.multi_reduction <add>, %45, %cst_23 [1] : vector<8x16xf32> to vector<8xf32>
      %47 = vector.shape_cast %46 : vector<8xf32> to vector<8x1xf32>
      %cst_24 = arith.constant dense<0.000000e+00> : vector<8x128xf32>
      %48 = tpu.matmul %42, %4, %cst_24 {dimension_numbers = #tpu.dot_dimension_numbers<[1], [0], [0], [1], [0, 0, 1, 1], [], []>} : vector<8x32xf32>, vector<32x128xf32>, vector<8x128xf32> -> vector<8x128xf32>
      %49 = vector.broadcast %47 : vector<8x1xf32> to vector<8x128xf32>
      %50 = arith.addf %48, %49 : vector<8x128xf32>
      %cst_25 = arith.constant 0.000000e+00 : f32
      %51 = vector.broadcast %cst_25 : f32 to vector<8x128xf32>
      %52 = arith.minimumf %50, %51 : vector<8x128xf32>
      %53 = math.absf %50 : vector<8x128xf32>
      %cst_26 = arith.constant 0.000000e+00 : f32
      %54 = vector.broadcast %cst_26 : f32 to vector<8x128xf32>
      %55 = arith.subf %54, %53 : vector<8x128xf32>
      %56 = math.exp %55 : vector<8x128xf32>
      %57 = math.log1p %56 : vector<8x128xf32>
      %58 = arith.subf %52, %57 : vector<8x128xf32>
      %cst_27 = arith.constant 0.000000e+00 : f32
      %59 = vector.shape_cast %31 : vector<8x1xi1> to vector<8x1xi1>
      %60 = vector.broadcast %59 : vector<8x1xi1> to vector<8x128xi1>
      %61 = vector.broadcast %cst_27 : f32 to vector<8x128xf32>
      %62 = arith.select %60, %58, %61 : vector<8x128xi1>, vector<8x128xf32>
      %c0_28 = arith.constant 0 : index
      %c0_29 = arith.constant 0 : index
      %c0_30 = arith.constant 0 : index
      %63 = vector.load %arg9[%c0_28, %c0_29, %c0_30] : memref<1x1x128xf32, #tpu.memory_space<vmem>>, vector<1x1x128xf32>
      %cst_31 = arith.constant dense<0.000000e+00> : vector<128xf32>
      %64 = vector.multi_reduction <add>, %62, %cst_31 [0] : vector<8x128xf32> to vector<128xf32>
      %65 = vector.shape_cast %64 : vector<128xf32> to vector<1x128xf32>
      %66 = vector.shape_cast %65 : vector<1x128xf32> to vector<1x1x128xf32>
      %67 = arith.addf %63, %66 : vector<1x1x128xf32>
      %c0_32 = arith.constant 0 : index
      %c0_33 = arith.constant 0 : index
      %c0_34 = arith.constant 0 : index
      %68 = vector.load %arg9[%c0_32, %c0_33, %c0_34] : memref<1x1x128xf32, #tpu.memory_space<vmem>>, vector<1x1x128xf32>
      tpu.vector_store %arg9[%c0_32, %c0_33, %c0_34], %67 {strides = array<i32>} : memref<1x1x128xf32, #tpu.memory_space<vmem>>, vector<1x1x128xf32>,
    } else {
    }
    %c8_i32_11 = arith.constant 8 : i32
    %16 = arith.addi %0, %c8_i32_11 : i32
    %c8_i32_12 = arith.constant 8 : i32
    %17 = arith.cmpi sle, %16, %c8_i32_12 : i32
    %c8_i32_13 = arith.constant 8 : i32
    %18 = arith.cmpi slt, %0, %c8_i32_13 : i32
    %true_14 = arith.constant true
    %19 = arith.xori %17, %true_14 : i1
    %20 = arith.andi %18, %19 : i1
    %21 = arith.extui %17 : i1 to i32
    %c0_i32_15 = arith.constant 0 : i32
    %22 = arith.cmpi ne, %21, %c0_i32_15 : i32
    scf.if %22 {
      %c0_17 = arith.constant 0 : index
      %c0_18 = arith.constant 0 : index
      %25 = vector.load %arg6[%c0_17, %c0_18] : memref<8x32xf32, #tpu.memory_space<vmem>>, vector<8x32xf32>
      %c0_19 = arith.constant 0 : index
      %c0_20 = arith.constant 0 : index
      %26 = vector.load %arg7[%c0_19, %c0_20] : memref<8x16xf32, #tpu.memory_space<vmem>>, vector<8x16xf32>
      %27 = vector.broadcast %5 : vector<1x32xf32> to vector<8x32xf32>
      %28 = arith.mulf %27, %25 : vector<8x32xf32>
      %29 = vector.broadcast %6 : vector<1x16xf32> to vector<8x16xf32>
      %30 = arith.mulf %26, %29 : vector<8x16xf32>
      %cst = arith.constant dense<0.000000e+00> : vector<8xf32>
      %31 = vector.multi_reduction <add>, %30, %cst [1] : vector<8x16xf32> to vector<8xf32>
      %32 = vector.shape_cast %31 : vector<8xf32> to vector<8x1xf32>
      %cst_21 = arith.constant dense<0.000000e+00> : vector<8x128xf32>
      %33 = tpu.matmul %28, %4, %cst_21 {dimension_numbers = #tpu.dot_dimension_numbers<[1], [0], [0], [1], [0, 0, 1, 1], [], []>} : vector<8x32xf32>, vector<32x128xf32>, vector<8x128xf32> -> vector<8x128xf32>
      %34 = vector.broadcast %32 : vector<8x1xf32> to vector<8x128xf32>
      %35 = arith.addf %33, %34 : vector<8x128xf32>
      %cst_22 = arith.constant 0.000000e+00 : f32
      %36 = vector.broadcast %cst_22 : f32 to vector<8x128xf32>
      %37 = arith.maximumf %35, %36 : vector<8x128xf32>
      %38 = math.absf %35 : vector<8x128xf32>
      %cst_23 = arith.constant 0.000000e+00 : f32
      %39 = vector.broadcast %cst_23 : f32 to vector<8x128xf32>
      %40 = arith.subf %39, %38 : vector<8x128xf32>
      %41 = math.exp %40 : vector<8x128xf32>
      %42 = math.log1p %41 : vector<8x128xf32>
      %43 = arith.addf %37, %42 : vector<8x128xf32>
      %cst_24 = arith.constant 0.000000e+00 : f32
      %44 = vector.broadcast %cst_24 : f32 to vector<8x128xf32>
      %45 = arith.subf %44, %43 : vector<8x128xf32>
      %c0_25 = arith.constant 0 : index
      %c0_26 = arith.constant 0 : index
      %c0_27 = arith.constant 0 : index
      %46 = vector.load %arg9[%c0_25, %c0_26, %c0_27] : memref<1x1x128xf32, #tpu.memory_space<vmem>>, vector<1x1x128xf32>
      %cst_28 = arith.constant dense<0.000000e+00> : vector<128xf32>
      %47 = vector.multi_reduction <add>, %45, %cst_28 [0] : vector<8x128xf32> to vector<128xf32>
      %48 = vector.shape_cast %47 : vector<128xf32> to vector<1x128xf32>
      %49 = vector.shape_cast %48 : vector<1x128xf32> to vector<1x1x128xf32>
      %50 = arith.addf %46, %49 : vector<1x1x128xf32>
      %c0_29 = arith.constant 0 : index
      %c0_30 = arith.constant 0 : index
      %c0_31 = arith.constant 0 : index
      %51 = vector.load %arg9[%c0_29, %c0_30, %c0_31] : memref<1x1x128xf32, #tpu.memory_space<vmem>>, vector<1x1x128xf32>
      tpu.vector_store %arg9[%c0_29, %c0_30, %c0_31], %50 {strides = array<i32>} : memref<1x1x128xf32, #tpu.memory_space<vmem>>, vector<1x1x128xf32>,
    } else {
    }
    %23 = arith.extui %20 : i1 to i32
    %c0_i32_16 = arith.constant 0 : i32
    %24 = arith.cmpi ne, %23, %c0_i32_16 : i32
    scf.if %24 {
      %c0_17 = arith.constant 0 : index
      %c0_18 = arith.constant 0 : index
      %25 = vector.load %arg6[%c0_17, %c0_18] : memref<8x32xf32, #tpu.memory_space<vmem>>, vector<8x32xf32>
      %c0_19 = arith.constant 0 : index
      %c0_20 = arith.constant 0 : index
      %26 = vector.load %arg7[%c0_19, %c0_20] : memref<8x16xf32, #tpu.memory_space<vmem>>, vector<8x16xf32>
      %27 = tpu.iota {dimensions = array<i32: 0>} : vector<8x1xi32>
      %28 = vector.broadcast %0 : i32 to vector<8x1xi32>
      %29 = arith.addi %28, %27 : vector<8x1xi32>
      %c8_i32_21 = arith.constant 8 : i32
      %30 = vector.broadcast %c8_i32_21 : i32 to vector<8x1xi32>
      %31 = arith.cmpi slt, %29, %30 : vector<8x1xi32>
      %cst = arith.constant 0.000000e+00 : f32
      %32 = vector.shape_cast %31 : vector<8x1xi1> to vector<8x1xi1>
      %33 = vector.broadcast %32 : vector<8x1xi1> to vector<8x32xi1>
      %34 = vector.broadcast %cst : f32 to vector<8x32xf32>
      %35 = arith.select %33, %25, %34 : vector<8x32xi1>, vector<8x32xf32>
      %cst_22 = arith.constant 0.000000e+00 : f32
      %36 = vector.shape_cast %31 : vector<8x1xi1> to vector<8x1xi1>
      %37 = vector.broadcast %36 : vector<8x1xi1> to vector<8x16xi1>
      %38 = vector.broadcast %cst_22 : f32 to vector<8x16xf32>
      %39 = arith.select %37, %26, %38 : vector<8x16xi1>, vector<8x16xf32>
      %40 = vector.broadcast %5 : vector<1x32xf32> to vector<8x32xf32>
      %41 = arith.mulf %40, %35 : vector<8x32xf32>
      %42 = vector.broadcast %6 : vector<1x16xf32> to vector<8x16xf32>
      %43 = arith.mulf %39, %42 : vector<8x16xf32>
      %cst_23 = arith.constant dense<0.000000e+00> : vector<8xf32>
      %44 = vector.multi_reduction <add>, %43, %cst_23 [1] : vector<8x16xf32> to vector<8xf32>
      %45 = vector.shape_cast %44 : vector<8xf32> to vector<8x1xf32>
      %cst_24 = arith.constant dense<0.000000e+00> : vector<8x128xf32>
      %46 = tpu.matmul %41, %4, %cst_24 {dimension_numbers = #tpu.dot_dimension_numbers<[1], [0], [0], [1], [0, 0, 1, 1], [], []>} : vector<8x32xf32>, vector<32x128xf32>, vector<8x128xf32> -> vector<8x128xf32>
      %47 = vector.broadcast %45 : vector<8x1xf32> to vector<8x128xf32>
      %48 = arith.addf %46, %47 : vector<8x128xf32>
      %cst_25 = arith.constant 0.000000e+00 : f32
      %49 = vector.broadcast %cst_25 : f32 to vector<8x128xf32>
      %50 = arith.maximumf %48, %49 : vector<8x128xf32>
      %51 = math.absf %48 : vector<8x128xf32>
      %cst_26 = arith.constant 0.000000e+00 : f32
      %52 = vector.broadcast %cst_26 : f32 to vector<8x128xf32>
      %53 = arith.subf %52, %51 : vector<8x128xf32>
      %54 = math.exp %53 : vector<8x128xf32>
      %55 = math.log1p %54 : vector<8x128xf32>
      %56 = arith.addf %50, %55 : vector<8x128xf32>
      %cst_27 = arith.constant 0.000000e+00 : f32
      %57 = vector.broadcast %cst_27 : f32 to vector<8x128xf32>
      %58 = arith.subf %57, %56 : vector<8x128xf32>
      %cst_28 = arith.constant 0.000000e+00 : f32
      %59 = vector.shape_cast %31 : vector<8x1xi1> to vector<8x1xi1>
      %60 = vector.broadcast %59 : vector<8x1xi1> to vector<8x128xi1>
      %61 = vector.broadcast %cst_28 : f32 to vector<8x128xf32>
      %62 = arith.select %60, %58, %61 : vector<8x128xi1>, vector<8x128xf32>
      %c0_29 = arith.constant 0 : index
      %c0_30 = arith.constant 0 : index
      %c0_31 = arith.constant 0 : index
      %63 = vector.load %arg9[%c0_29, %c0_30, %c0_31] : memref<1x1x128xf32, #tpu.memory_space<vmem>>, vector<1x1x128xf32>
      %cst_32 = arith.constant dense<0.000000e+00> : vector<128xf32>
      %64 = vector.multi_reduction <add>, %62, %cst_32 [0] : vector<8x128xf32> to vector<128xf32>
      %65 = vector.shape_cast %64 : vector<128xf32> to vector<1x128xf32>
      %66 = vector.shape_cast %65 : vector<1x128xf32> to vector<1x1x128xf32>
      %67 = arith.addf %63, %66 : vector<1x1x128xf32>
      %c0_33 = arith.constant 0 : index
      %c0_34 = arith.constant 0 : index
      %c0_35 = arith.constant 0 : index
      %68 = vector.load %arg9[%c0_33, %c0_34, %c0_35] : memref<1x1x128xf32, #tpu.memory_space<vmem>>, vector<1x1x128xf32>
      tpu.vector_store %arg9[%c0_33, %c0_34, %c0_35], %67 {strides = array<i32>} : memref<1x1x128xf32, #tpu.memory_space<vmem>>, vector<1x1x128xf32>,
    } else {
    }
    return
  }
  func.func @transform_0(%arg0: i32, %arg1: i32) -> (i32, i32) {
    %c0_i32 = arith.constant 0 : i32
    %c0_i32_0 = arith.constant 0 : i32
    %c0_i32_1 = arith.constant 0 : i32
    return %c0_i32, %c0_i32_0 : i32, i32
  }
  func.func @transform_1(%arg0: i32, %arg1: i32) -> (i32, i32) {
    %c0_i32 = arith.constant 0 : i32
    %c0_i32_0 = arith.constant 0 : i32
    %c0_i32_1 = arith.constant 0 : i32
    return %c0_i32, %c0_i32_0 : i32, i32
  }
  func.func @transform_2(%arg0: i32, %arg1: i32) -> (i32, i32) {
    %c0_i32 = arith.constant 0 : i32
    %0 = arith.minsi %arg1, %c0_i32 : i32
    %c0_i32_0 = arith.constant 0 : i32
    %c0_i32_1 = arith.constant 0 : i32
    return %0, %c0_i32_0 : i32, i32
  }
  func.func @transform_3(%arg0: i32, %arg1: i32) -> (i32, i32) {
    %c0_i32 = arith.constant 0 : i32
    %0 = arith.minsi %arg1, %c0_i32 : i32
    %c0_i32_0 = arith.constant 0 : i32
    %c0_i32_1 = arith.constant 0 : i32
    return %0, %c0_i32_0 : i32, i32
  }
  func.func @transform_4(%arg0: i32, %arg1: i32) -> (i32, i32) {
    %c0_i32 = arith.constant 0 : i32
    %0 = arith.minsi %arg1, %c0_i32 : i32
    %c0_i32_0 = arith.constant 0 : i32
    %c0_i32_1 = arith.constant 0 : i32
    return %0, %c0_i32_0 : i32, i32
  }
  func.func @transform_5(%arg0: i32, %arg1: i32) -> (i32, i32) {
    %c0_i32 = arith.constant 0 : i32
    %0 = arith.minsi %arg1, %c0_i32 : i32
    %c0_i32_0 = arith.constant 0 : i32
    %c0_i32_1 = arith.constant 0 : i32
    return %0, %c0_i32_0 : i32, i32
  }
  func.func @transform_6(%arg0: i32, %arg1: i32) -> (i32, i32) {
    %c0_i32 = arith.constant 0 : i32
    %c0_i32_0 = arith.constant 0 : i32
    return %c0_i32, %arg0 : i32, i32
  }
  func.func @transform_7(%arg0: i32, %arg1: i32) -> (i32, i32, i32) {
    %c0_i32 = arith.constant 0 : i32
    %c0_i32_0 = arith.constant 0 : i32
    %c0_i32_1 = arith.constant 0 : i32
    return %c0_i32, %c0_i32_0, %arg0 : i32, i32, i32
  }
}

</mosaic_0001>

<llo_original>
// kernel: tpu_custom_call.1
$region0: #{tpu_custom_call.1}
  #allocation0 [shape = 'u32[]', space=smem, size = 0x4, offset = 0x4, fixed_abs, tag = 'smem constant byte address 0x4 - core index']
  #allocation1 [shape = 'u32[72,128]{1,0:T(1,128)}', space=vmem, size = 0x9000, scoped, tag = 'internal scratch']
  %s0 = inlined_call_operand.hbm [shape: f32[1,32], index: 0, kind: input, shape index: {}]
  %s1 = inlined_call_operand.hbm [shape: f32[1,16], index: 1, kind: input, shape index: {}]
  %s2 = inlined_call_operand.hbm [shape: f32[8,32], index: 2, kind: input, shape index: {}]
  %s3 = inlined_call_operand.hbm [shape: f32[8,16], index: 3, kind: input, shape index: {}]
  %s4 = inlined_call_operand.hbm [shape: f32[8,32], index: 4, kind: input, shape index: {}]
  %s5 = inlined_call_operand.hbm [shape: f32[8,16], index: 5, kind: input, shape index: {}]
  %s6 = inlined_call_operand.hbm [shape: f32[32,128], index: 6, kind: input, shape index: {}]
  %s7 = inlined_call_operand.hbm [shape: f32[1,1,128], index: 7, kind: output, shape index: {}]
  %s8 = sld [smem:[#allocation0]]
  $region86: #{tpu_custom_call.1} parent=0
    _
  %s10 = ssub.s32 1, %s8
  %s11 = scalar_select 0, %s10, %s8
  $region1: #{tpu_custom_call.1} parent=0
    #allocation2 [shape = 'u8[512]{0}', space=vmem, size = 0x400, scoped, tag = 'input window, operand 0, single buffered']
    #allocation3 [shape = 's32[1]{0}', space=sflag, size = 0x4, scoped, tag = 'scoped memory for tpu_custom_call.1']
    #allocation4 [shape = 's32[1]{0}', space=sflag, size = 0x4, scoped, tag = 'scoped memory for tpu_custom_call.1']
    #allocation5 [shape = 'u8[512]{0}', space=vmem, size = 0x400, scoped, tag = 'input window, operand 1, single buffered']
    #allocation6 [shape = 's32[1]{0}', space=sflag, size = 0x4, scoped, tag = 'scoped memory for tpu_custom_call.1']
    #allocation7 [shape = 'u8[4096]{0}', space=vmem, size = 0x1000, scoped, tag = 'input window, operand 2, single buffered']
    #allocation8 [shape = 'u8[4096]{0}', space=vmem, size = 0x1000, scoped, tag = 'input window, operand 3, single buffered']
    #allocation9 [shape = 's32[1]{0}', space=sflag, size = 0x4, scoped, tag = 'scoped memory for tpu_custom_call.1']
    #allocation10 [shape = 'u8[4096]{0}', space=vmem, size = 0x1000, scoped, tag = 'input window, operand 4, single buffered']
    #allocation11 [shape = 'u8[4096]{0}', space=vmem, size = 0x1000, scoped, tag = 'input window, operand 5, single buffered']
    #allocation12 [shape = 's32[1]{0}', space=sflag, size = 0x4, scoped, tag = 'scoped memory for tpu_custom_call.1']
    #allocation13 [shape = 'u8[16384]{0}', space=vmem, size = 0x4000, scoped, tag = 'input window, operand 6, single buffered']
    #allocation14 [shape = 'u8[512]{0}', space=vmem, size = 0x400, scoped, tag = 'output window, operand 0, single buffered']
    %12 = vsyncpa [#allocation3], 0
    %13 = vsyncpa [#allocation6], 0
    %14 = vsyncpa [#allocation9], 0
    %15 = vsyncpa [#allocation12], 0
    %16 = vsyncpa [#allocation4], 0
    // Predicated region
    $region2: #{tpu_custom_call.1} parent=1 // pred_check
      _
    $region3: #{tpu_custom_call.1} parent=1 // pred_check_branch
      %18 = sbr.rel (0) target = $region5
    $region4: #{tpu_custom_call.1} parent=1 // pred_region
      %20 = vsyncadd [#allocation3], 0
      %s22 = sshll.u32 %s0, 4
      %s23 = int_to_ptr.hbm [resolvable:$true] %s22
      %s24 = sshll.u32 [#allocation2], 4
      %s25 = int_to_ptr.vmem [resolvable:$true] %s24
      %27 = dma.hbm_to_vmem [thread:$0]  %s23, 16, %s25, [#allocation3]
    $region5: #{tpu_custom_call.1} parent=1 // pred_fallthru
      _
    // Predicated region
    $region6: #{tpu_custom_call.1} parent=1 // pred_check
      _
    $region7: #{tpu_custom_call.1} parent=1 // pred_check_branch
      %29 = sbr.rel (0) target = $region9
    $region8: #{tpu_custom_call.1} parent=1 // pred_region
      %31 = vsyncadd [#allocation6], 0
      %s33 = sshll.u32 %s1, 4
      %s34 = int_to_ptr.hbm [resolvable:$true] %s33
      %s35 = sshll.u32 [#allocation5], 4
      %s36 = int_to_ptr.vmem [resolvable:$true] %s35
      %38 = dma.hbm_to_vmem [thread:$0]  %s34, 16, %s36, [#allocation6]
    $region9: #{tpu_custom_call.1} parent=1 // pred_fallthru
      _
    // Predicated region
    $region10: #{tpu_custom_call.1} parent=1 // pred_check
      _
    $region11: #{tpu_custom_call.1} parent=1 // pred_check_branch
      %40 = sbr.rel (0) target = $region13
    $region12: #{tpu_custom_call.1} parent=1 // pred_region
      %42 = vsyncadd [#allocation6], 0
      %s44 = sshll.u32 %s2, 4
      %s45 = int_to_ptr.hbm [resolvable:$true] %s44
      %s46 = sshll.u32 [#allocation7], 4
      %s47 = int_to_ptr.vmem [resolvable:$true] %s46
      %49 = dma.hbm_to_vmem [thread:$0]  %s45, 128, %s47, [#allocation6]
    $region13: #{tpu_custom_call.1} parent=1 // pred_fallthru
      _
    // Predicated region
    $region14: #{tpu_custom_call.1} parent=1 // pred_check
      _
    $region15: #{tpu_custom_call.1} parent=1 // pred_check_branch
      %51 = sbr.rel (0) target = $region17
    $region16: #{tpu_custom_call.1} parent=1 // pred_region
      %53 = vsyncadd [#allocation9], 0
      %s55 = sshll.u32 %s3, 4
      %s56 = int_to_ptr.hbm [resolvable:$true] %s55
      %s57 = sshll.u32 [#allocation8], 4
      %s58 = int_to_ptr.vmem [resolvable:$true] %s57
      %60 = dma.hbm_to_vmem [thread:$0]  %s56, 128, %s58, [#allocation9]
    $region17: #{tpu_custom_call.1} parent=1 // pred_fallthru
      _
    // Predicated region
    $region18: #{tpu_custom_call.1} parent=1 // pred_check
      _
    $region19: #{tpu_custom_call.1} parent=1 // pred_check_branch
      %62 = sbr.rel (0) target = $region21
    $region20: #{tpu_custom_call.1} parent=1 // pred_region
      %64 = vsyncadd [#allocation9], 0
      %s66 = sshll.u32 %s4, 4
      %s67 = int_to_ptr.hbm [resolvable:$true] %s66
      %s68 = sshll.u32 [#allocation10], 4
      %s69 = int_to_ptr.vmem [resolvable:$true] %s68
      %71 = dma.hbm_to_vmem [thread:$0]  %s67, 128, %s69, [#allocation9]
    $region21: #{tpu_custom_call.1} parent=1 // pred_fallthru
      _
    // Predicated region
    $region22: #{tpu_custom_call.1} parent=1 // pred_check
      _
    $region23: #{tpu_custom_call.1} parent=1 // pred_check_branch
      %73 = sbr.rel (0) target = $region25
    $region24: #{tpu_custom_call.1} parent=1 // pred_region
      %75 = vsyncadd [#allocation12], 0
      %s77 = sshll.u32 %s5, 4
      %s78 = int_to_ptr.hbm [resolvable:$true] %s77
      %s79 = sshll.u32 [#allocation11], 4
      %s80 = int_to_ptr.vmem [resolvable:$true] %s79
      %82 = dma.hbm_to_vmem [thread:$0]  %s78, 128, %s80, [#allocation12]
    $region25: #{tpu_custom_call.1} parent=1 // pred_fallthru
      _
    // Predicated region
    $region26: #{tpu_custom_call.1} parent=1 // pred_check
      _
    $region27: #{tpu_custom_call.1} parent=1 // pred_check_branch
      %84 = sbr.rel (0) target = $region29
    $region28: #{tpu_custom_call.1} parent=1 // pred_region
      %86 = vsyncadd [#allocation12], 0
      %s87 = sshll.u32 %s6, 4
      %s88 = int_to_ptr.hbm [resolvable:$true] %s87
      %s89 = sshll.u32 [#allocation13], 4
      %s90 = int_to_ptr.vmem [resolvable:$true] %s89
      %95 = dma.hbm_to_vmem [thread:$0]  %s88, 512, %s90, [#allocation12], 128, 128, 8
    $region29: #{tpu_custom_call.1} parent=1 // pred_fallthru
      _
    // Predicated region
    $region30: #{tpu_custom_call.1} parent=1 // pred_check
      _
    $region31: #{tpu_custom_call.1} parent=1 // pred_check_branch
      %97 = sbr.rel (0) target = $region33
    $region32: #{tpu_custom_call.1} parent=1 // pred_region
      %99 = dma.done [#allocation3], 16
    $region33: #{tpu_custom_call.1} parent=1 // pred_fallthru
      _
    // Predicated region
    $region34: #{tpu_custom_call.1} parent=1 // pred_check
      _
    $region35: #{tpu_custom_call.1} parent=1 // pred_check_branch
      %101 = sbr.rel (0) target = $region37
    $region36: #{tpu_custom_call.1} parent=1 // pred_region
      %103 = dma.done [#allocation6], 16
    $region37: #{tpu_custom_call.1} parent=1 // pred_fallthru
      _
    // Predicated region
    $region38: #{tpu_custom_call.1} parent=1 // pred_check
      _
    $region39: #{tpu_custom_call.1} parent=1 // pred_check_branch
      %105 = sbr.rel (0) target = $region41
    $region40: #{tpu_custom_call.1} parent=1 // pred_region
      %107 = dma.done [#allocation6], 128
    $region41: #{tpu_custom_call.1} parent=1 // pred_fallthru
      _
    // Predicated region
    $region42: #{tpu_custom_call.1} parent=1 // pred_check
      _
    $region43: #{tpu_custom_call.1} parent=1 // pred_check_branch
      %109 = sbr.rel (0) target = $region45
    $region44: #{tpu_custom_call.1} parent=1 // pred_region
      %111 = dma.done [#allocation9], 128
    $region45: #{tpu_custom_call.1} parent=1 // pred_fallthru
      _
    // Predicated region
    $region46: #{tpu_custom_call.1} parent=1 // pred_check
      _
    $region47: #{tpu_custom_call.1} parent=1 // pred_check_branch
      %113 = sbr.rel (0) target = $region49
    $region48: #{tpu_custom_call.1} parent=1 // pred_region
      %115 = dma.done [#allocation9], 128
    $region49: #{tpu_custom_call.1} parent=1 // pred_fallthru
      _
    // Predicated region
    $region50: #{tpu_custom_call.1} parent=1 // pred_check
      _
    $region51: #{tpu_custom_call.1} parent=1 // pred_check_branch
      %117 = sbr.rel (0) target = $region53
    $region52: #{tpu_custom_call.1} parent=1 // pred_region
      %119 = dma.done [#allocation12], 128
    $region53: #{tpu_custom_call.1} parent=1 // pred_fallthru
      _
    // Predicated region
    $region54: #{tpu_custom_call.1} parent=1 // pred_check
      _
    $region55: #{tpu_custom_call.1} parent=1 // pred_check_branch
      %121 = sbr.rel (0) target = $region57
    $region56: #{tpu_custom_call.1} parent=1 // pred_region
      %123 = dma.done [#allocation12], 512
    $region57: #{tpu_custom_call.1} parent=1 // pred_fallthru
      _
    %s124 = smul.u32 0, 8
    %p125 = scmp.eq.s32.totalorder 0, 0
    // Predicated region
    $region58: #{tpu_custom_call.1} parent=1 // pred_check
      %p126 = pneg %p125
    $region59: #{tpu_custom_call.1} parent=1 // pred_check_branch
      %128 = sbr.rel (%p126) target = $region61
    $region60: #{tpu_custom_call.1} parent=1 // pred_region
      %129 = vst [vmem:[#allocation14] sm:$0x1] 0.0
    $region61: #{tpu_custom_call.1} parent=1 // pred_fallthru
      _
    %v130 = vld [vmem:[#allocation13] sm:$0xff]
    %v131 = vld [vmem:[#allocation13 + $0x8] sm:$0xff]
    %v132 = vld [vmem:[#allocation13 + $0x10] sm:$0xff]
    %v133 = vld [vmem:[#allocation13 + $0x18] sm:$0xff]
    %v134 = vld [vmem:[#allocation2] sm:$0x1]
    %v135 = vld [vmem:[#allocation5] sm:$0x1]
    %s136 = sadd.s32 %s124, 8
    %p137 = scmp.le.s32.totalorder %s136, 8
    %p138 = scmp.lt.s32.totalorder %s124, 8
    %p139 = scmp.gt.s32.totalorder %s136, 8
    %p140 = pnand %p138, %p139
    %p141 = pneg %p140
    // Predicated region
    $region62: #{tpu_custom_call.1} parent=1 // pred_check
      %p142 = pneg %p137
    $region63: #{tpu_custom_call.1} parent=1 // pred_check_branch
      %144 = sbr.rel (%p142) target = $region65
    $region64: #{tpu_custom_call.1} parent=1 // pred_region
      %v145 = vld [vmem:[#allocation7] sm:$0xff]
      %v146 = vld [vmem:[#allocation8] sm:$0xff]
      %v148 = vperm.slane %v134, 0
      %v150 = vsub.f32 %v148, %v145
      %v151 = vmul.f32 %v145, %v150
      %v153 = vperm.slane %v135, 0
      %v155 = vsub.f32 %v153, %v146
      %v156 = vmul.f32 %v146, %v155
      %vm157 = vcmask 130048
      %v158 = vsel %vm157, %v156, 0.0
      %159 = vadd.xlane.f32.xlu0 %v158
      %v160 = vpop.xlane.xlu0 %159
      %vm161 = vcmask 261120
      %v163 = vsel %vm161, %v151, 0
      %165 = vmatpush.msra.mxu0 0.0
      %166 = vmatpush.msra.mxu0 0.0
      %167 = vmatpush.msra.mxu0 0.0
      %168 = vmatpush.msra.mxu0 0.0
      %169 = vmatpush.msra.mxu0 0.0
      %170 = vmatpush.msra.mxu0 0.0
      %171 = vmatpush.msra.mxu0 0.0
      %172 = vmatpush.msra.mxu0 0.0
      %173 = vmatpush.msra.mxu0 0.0
      %174 = vmatpush.msra.mxu0 0.0
      %175 = vmatpush.msra.mxu0 0.0
      %176 = vmatpush.msra.mxu0 0.0
      %177 = vmatpush.msra.mxu0 %v133
      %178 = vmatpush.msra.mxu0 %v132
      %179 = vmatpush.msra.mxu0 %v131
      %180 = vmatpush.msra.mxu0 %v130
      %181 = vmatmul.f32.gmra.mxu0 %v163
      %v182 = vpop.f32.mrf.mxu0
      %v183 = vadd.f32 %v160, %v182
      %184 = vdwg.mxu0
      %v185 = vmin.f32 %v183, 0.0
      %v186 = vand.u32 2147483647, %v183
      %v187 = vsub.f32 0.0, %v186
      %v188 = vmul.f32 %v187, 1.442695
      %v189 = vpow.pop %v188
      %v190 = vadd.f32 %v189, 1.0
      %v191 = vlog2.pop %v190
      %v192 = vmul.f32 %v191, 0.6931472
      %v193 = vmul.f32 -0.5, %v189
      %v194 = vadd.f32 %v193, 1.0
      %v195 = vmul.f32 %v194, %v189
      %v196 = vand.u32 2147483647, %v189
      %vm197 = vcmp.lt.f32.partialorder %v196, 0.0004427343
      %v198 = vsel %vm197, %v195, %v192
      %v199 = vsub.f32 %v185, %v198
      %v200 = vld [vmem:[#allocation14] sm:$0x1]
      %v201 = vrot.slane %v199, 4
      %v202 = vadd.f32 %v199, %v201
      %v203 = vrot.slane %v202, 2
      %v204 = vadd.f32 %v202, %v203
      %v205 = vrot.slane %v204, 1
      %v206 = vadd.f32 %v204, %v205
      %v207 = vadd.f32 %v200, %v206
      %208 = vst [vmem:[#allocation14] sm:$0x1] %v207
    $region65: #{tpu_custom_call.1} parent=1 // pred_fallthru
      _
    // Predicated region
    $region66: #{tpu_custom_call.1} parent=1 // pred_check
      _
    $region67: #{tpu_custom_call.1} parent=1 // pred_check_branch
      %210 = sbr.rel (%p140) target = $region69
    $region68: #{tpu_custom_call.1} parent=1 // pred_region
      %v211 = vld [vmem:[#allocation7] sm:$0xff]
      %v212 = vld [vmem:[#allocation8] sm:$0xff]
      %v213 = vlaneseq
      %v214 = vshrl.u32 %v213, 7
      %v215 = vstv %s124
      %v216 = vadd.s32 %v215, %v214
      %vm217 = vcmp.lt.s32.totalorder %v216, 8
      %v218 = vsel %vm217, 1, 0
      %vm219 = vcmp.eq.s32.totalorder %v218, 1
      %v220 = vsel %vm219, %v211, 0.0
      %v221 = vsel %vm219, %v212, 0.0
      %v223 = vperm.slane %v134, 0
      %v225 = vsub.f32 %v223, %v220
      %v226 = vmul.f32 %v220, %v225
      %v228 = vperm.slane %v135, 0
      %v230 = vsub.f32 %v228, %v221
      %v231 = vmul.f32 %v221, %v230
      %vm232 = vcmask 130048
      %v233 = vsel %vm232, %v231, 0.0
      %234 = vadd.xlane.f32.xlu0 %v233
      %v235 = vpop.xlane.xlu0 %234
      %vm236 = vcmask 261120
      %v238 = vsel %vm236, %v226, 0
      %240 = vmatpush.msra.mxu0 0.0
      %241 = vmatpush.msra.mxu0 0.0
      %242 = vmatpush.msra.mxu0 0.0
      %243 = vmatpush.msra.mxu0 0.0
      %244 = vmatpush.msra.mxu0 0.0
      %245 = vmatpush.msra.mxu0 0.0
      %246 = vmatpush.msra.mxu0 0.0
      %247 = vmatpush.msra.mxu0 0.0
      %248 = vmatpush.msra.mxu0 0.0
      %249 = vmatpush.msra.mxu0 0.0
      %250 = vmatpush.msra.mxu0 0.0
      %251 = vmatpush.msra.mxu0 0.0
      %252 = vmatpush.msra.mxu0 %v133
      %253 = vmatpush.msra.mxu0 %v132
      %254 = vmatpush.msra.mxu0 %v131
      %255 = vmatpush.msra.mxu0 %v130
      %256 = vmatmul.f32.gmra.mxu0 %v238
      %v257 = vpop.f32.mrf.mxu0
      %v258 = vadd.f32 %v235, %v257
      %259 = vdwg.mxu0
      %v260 = vmin.f32 %v258, 0.0
      %v261 = vand.u32 2147483647, %v258
      %v262 = vsub.f32 0.0, %v261
      %v263 = vmul.f32 %v262, 1.442695
      %v264 = vpow.pop %v263
      %v265 = vadd.f32 %v264, 1.0
      %v266 = vlog2.pop %v265
      %v267 = vmul.f32 %v266, 0.6931472
      %v268 = vmul.f32 -0.5, %v264
      %v269 = vadd.f32 %v268, 1.0
      %v270 = vmul.f32 %v269, %v264
      %v271 = vand.u32 2147483647, %v264
      %vm272 = vcmp.lt.f32.partialorder %v271, 0.0004427343
      %v273 = vsel %vm272, %v270, %v267
      %v274 = vsub.f32 %v260, %v273
      %v275 = vsel %vm219, %v274, 0.0
      %v276 = vld [vmem:[#allocation14] sm:$0x1]
      %v277 = vrot.slane %v275, 4
      %v278 = vadd.f32 %v275, %v277
      %v279 = vrot.slane %v278, 2
      %v280 = vadd.f32 %v278, %v279
      %v281 = vrot.slane %v280, 1
      %v282 = vadd.f32 %v280, %v281
      %v283 = vadd.f32 %v276, %v282
      %284 = vst [vmem:[#allocation14] sm:$0x1] %v283
    $region69: #{tpu_custom_call.1} parent=1 // pred_fallthru
      _
    // Predicated region
    $region70: #{tpu_custom_call.1} parent=1 // pred_check
      %p285 = pneg %p137
    $region71: #{tpu_custom_call.1} parent=1 // pred_check_branch
      %287 = sbr.rel (%p285) target = $region73
    $region72: #{tpu_custom_call.1} parent=1 // pred_region
      %v288 = vld [vmem:[#allocation10] sm:$0xff]
      %v289 = vld [vmem:[#allocation11] sm:$0xff]
      %v291 = vperm.slane %v134, 0
      %v293 = vmul.f32 %v291, %v288
      %v295 = vperm.slane %v135, 0
      %v297 = vmul.f32 %v289, %v295
      %vm298 = vcmask 130048
      %v299 = vsel %vm298, %v297, 0.0
      %300 = vadd.xlane.f32.xlu0 %v299
      %v301 = vpop.xlane.xlu0 %300
      %vm302 = vcmask 261120
      %v304 = vsel %vm302, %v293, 0
      %306 = vmatpush.msra.mxu0 0.0
      %307 = vmatpush.msra.mxu0 0.0
      %308 = vmatpush.msra.mxu0 0.0
      %309 = vmatpush.msra.mxu0 0.0
      %310 = vmatpush.msra.mxu0 0.0
      %311 = vmatpush.msra.mxu0 0.0
      %312 = vmatpush.msra.mxu0 0.0
      %313 = vmatpush.msra.mxu0 0.0
      %314 = vmatpush.msra.mxu0 0.0
      %315 = vmatpush.msra.mxu0 0.0
      %316 = vmatpush.msra.mxu0 0.0
      %317 = vmatpush.msra.mxu0 0.0
      %318 = vmatpush.msra.mxu0 %v133
      %319 = vmatpush.msra.mxu0 %v132
      %320 = vmatpush.msra.mxu0 %v131
      %321 = vmatpush.msra.mxu0 %v130
      %322 = vmatmul.f32.gmra.mxu0 %v304
      %v323 = vpop.f32.mrf.mxu0
      %v324 = vadd.f32 %v301, %v323
      %325 = vdwg.mxu0
      %v326 = vmax.f32 %v324, 0.0
      %v327 = vand.u32 2147483647, %v324
      %v328 = vsub.f32 0.0, %v327
      %v329 = vmul.f32 %v328, 1.442695
      %v330 = vpow.pop %v329
      %v331 = vadd.f32 %v330, 1.0
      %v332 = vlog2.pop %v331
      %v333 = vmul.f32 %v332, 0.6931472
      %v334 = vmul.f32 -0.5, %v330
      %v335 = vadd.f32 %v334, 1.0
      %v336 = vmul.f32 %v335, %v330
      %v337 = vand.u32 2147483647, %v330
      %vm338 = vcmp.lt.f32.partialorder %v337, 0.0004427343
      %v339 = vsel %vm338, %v336, %v333
      %v340 = vadd.f32 %v326, %v339
      %v341 = vsub.f32 0.0, %v340
      %v342 = vld [vmem:[#allocation14] sm:$0x1]
      %v343 = vrot.slane %v341, 4
      %v344 = vadd.f32 %v341, %v343
      %v345 = vrot.slane %v344, 2
      %v346 = vadd.f32 %v344, %v345
      %v347 = vrot.slane %v346, 1
      %v348 = vadd.f32 %v346, %v347
      %v349 = vadd.f32 %v342, %v348
      %350 = vst [vmem:[#allocation14] sm:$0x1] %v349
    $region73: #{tpu_custom_call.1} parent=1 // pred_fallthru
      _
    // Predicated region
    $region74: #{tpu_custom_call.1} parent=1 // pred_check
      _
    $region75: #{tpu_custom_call.1} parent=1 // pred_check_branch
      %352 = sbr.rel (%p140) target = $region77
    $region76: #{tpu_custom_call.1} parent=1 // pred_region
      %v353 = vld [vmem:[#allocation10] sm:$0xff]
      %v354 = vld [vmem:[#allocation11] sm:$0xff]
      %v355 = vlaneseq
      %v356 = vshrl.u32 %v355, 7
      %v357 = vstv %s124
      %v358 = vadd.s32 %v357, %v356
      %vm359 = vcmp.lt.s32.totalorder %v358, 8
      %v360 = vsel %vm359, 1, 0
      %vm361 = vcmp.eq.s32.totalorder %v360, 1
      %v362 = vsel %vm361, %v353, 0.0
      %v363 = vsel %vm361, %v354, 0.0
      %v365 = vperm.slane %v134, 0
      %v367 = vmul.f32 %v365, %v362
      %v369 = vperm.slane %v135, 0
      %v371 = vmul.f32 %v363, %v369
      %vm372 = vcmask 130048
      %v373 = vsel %vm372, %v371, 0.0
      %374 = vadd.xlane.f32.xlu0 %v373
      %v375 = vpop.xlane.xlu0 %374
      %vm376 = vcmask 261120
      %v378 = vsel %vm376, %v367, 0
      %380 = vmatpush.msra.mxu0 0.0
      %381 = vmatpush.msra.mxu0 0.0
      %382 = vmatpush.msra.mxu0 0.0
      %383 = vmatpush.msra.mxu0 0.0
      %384 = vmatpush.msra.mxu0 0.0
      %385 = vmatpush.msra.mxu0 0.0
      %386 = vmatpush.msra.mxu0 0.0
      %387 = vmatpush.msra.mxu0 0.0
      %388 = vmatpush.msra.mxu0 0.0
      %389 = vmatpush.msra.mxu0 0.0
      %390 = vmatpush.msra.mxu0 0.0
      %391 = vmatpush.msra.mxu0 0.0
      %392 = vmatpush.msra.mxu0 %v133
      %393 = vmatpush.msra.mxu0 %v132
      %394 = vmatpush.msra.mxu0 %v131
      %395 = vmatpush.msra.mxu0 %v130
      %396 = vmatmul.f32.gmra.mxu0 %v378
      %v397 = vpop.f32.mrf.mxu0
      %v398 = vadd.f32 %v375, %v397
      %399 = vdwg.mxu0
      %v400 = vmax.f32 %v398, 0.0
      %v401 = vand.u32 2147483647, %v398
      %v402 = vsub.f32 0.0, %v401
      %v403 = vmul.f32 %v402, 1.442695
      %v404 = vpow.pop %v403
      %v405 = vadd.f32 %v404, 1.0
      %v406 = vlog2.pop %v405
      %v407 = vmul.f32 %v406, 0.6931472
      %v408 = vmul.f32 -0.5, %v404
      %v409 = vadd.f32 %v408, 1.0
      %v410 = vmul.f32 %v409, %v404
      %v411 = vand.u32 2147483647, %v404
      %vm412 = vcmp.lt.f32.partialorder %v411, 0.0004427343
      %v413 = vsel %vm412, %v410, %v407
      %v414 = vadd.f32 %v400, %v413
      %v415 = vsub.f32 0.0, %v414
      %v416 = vsel %vm361, %v415, 0.0
      %v417 = vld [vmem:[#allocation14] sm:$0x1]
      %v418 = vrot.slane %v416, 4
      %v419 = vadd.f32 %v416, %v418
      %v420 = vrot.slane %v419, 2
      %v421 = vadd.f32 %v419, %v420
      %v422 = vrot.slane %v421, 1
      %v423 = vadd.f32 %v421, %v422
      %v424 = vadd.f32 %v417, %v423
      %425 = vst [vmem:[#allocation14] sm:$0x1] %v424
    $region77: #{tpu_custom_call.1} parent=1 // pred_fallthru
      _
    // Predicated region
    $region78: #{tpu_custom_call.1} parent=1 // pred_check
      _
    $region79: #{tpu_custom_call.1} parent=1 // pred_check_branch
      %427 = sbr.rel (0) target = $region81
    $region80: #{tpu_custom_call.1} parent=1 // pred_region
      %429 = vsyncadd [#allocation4], 0
      %s431 = sshll.u32 [#allocation14], 4
      %s432 = int_to_ptr.vmem [resolvable:$true] %s431
      %s433 = sshll.u32 %s7, 4
      %s434 = int_to_ptr.hbm [resolvable:$true] %s433
      %436 = dma.vmem_to_hbm [thread:$0]  %s432, 16, %s434, [#allocation4]
    $region81: #{tpu_custom_call.1} parent=1 // pred_fallthru
      _
    // Predicated region
    $region82: #{tpu_custom_call.1} parent=1 // pred_check
      _
    $region83: #{tpu_custom_call.1} parent=1 // pred_check_branch
      %438 = sbr.rel (0) target = $region85
    $region84: #{tpu_custom_call.1} parent=1 // pred_region
      %440 = dma.done [#allocation4], 16
    $region85: #{tpu_custom_call.1} parent=1 // pred_fallthru
      _
    %441 = vsyncpa [#allocation3], 1
    %442 = vsyncpa [#allocation6], 1
    %443 = vsyncpa [#allocation9], 1
    %444 = vsyncpa [#allocation12], 1
    %445 = vsyncpa [#allocation4], 1

</llo_original>
